<compile_context>
chip_gen: v5e
topology: v5e:2x2
jax: 0.10.0
libtpu: 0.0.40
codegen_flags: <defaults>
</compile_context>

<pallas_src>
import functools

import jax
import jax.numpy as jnp
from jax.experimental import pallas as pl
from jax.experimental.pallas import tpu as pltpu


def _round_up(v, m):
    return (v + m - 1) // m * m


def _global_sa_kernel(tpc, bid_col,
                      lo_ref, hi_ref,                 # scalar-prefetch (SMEM)
                      xin_ref,                        # packed points tile
                      w1_ref, b1_ref, w2_ref, b2_ref, w3_ref, b3_ref,
                      out_ref):
    """One point tile: fused MLP + running segment max into the resident out block."""
    c = pl.program_id(0)          # core split ("parallel")
    t = pl.program_id(1)          # point-tile index (reduction axis, "arbitrary")

    @pl.when(t == 0)
    def _init():
        out_ref[...] = jnp.full_like(out_ref, -jnp.inf)

    xin = xin_ref[...]                                     # (tile_n, Cp) f32
    mm_dtype = w1_ref.dtype                                # bf16 (or f32)

    # --- MLP: bf16 MXU matmuls, f32 accumulation / bias / ReLU ---------------
    h = jnp.dot(xin.astype(mm_dtype), w1_ref[...],
                preferred_element_type=jnp.float32) + b1_ref[...]
    h = jnp.maximum(h, 0.0)
    h = jnp.dot(h.astype(mm_dtype), w2_ref[...],
                preferred_element_type=jnp.float32) + b2_ref[...]
    h = jnp.maximum(h, 0.0)
    h = jnp.dot(h.astype(mm_dtype), w3_ref[...],
                preferred_element_type=jnp.float32) + b3_ref[...]
    h = jnp.maximum(h, 0.0)                                # (tile_n, Dp) f32

    # --- global_max_pool: only over batches present in this tile -------------
    bids = xin[:, bid_col:bid_col + 1]                     # (tile_n, 1) exact-int f32
    idx = c * tpc + t
    lo = lo_ref[idx]                                       # first batch id in tile
    hi = hi_ref[idx]                                       # last batch id in tile
    row_iota = jax.lax.broadcasted_iota(jnp.int32, out_ref.shape, 0)  # hoisted

    @pl.loop(lo, hi + 1)                                   # 1-2 iters for sorted batch
    def _pool(b):
        seg = jnp.max(jnp.where(bids == b.astype(jnp.float32), h, -jnp.inf),
                      axis=0, keepdims=True)               # (1, Dp)
        out_ref[...] = jnp.where(row_iota == b,
                                 jnp.maximum(out_ref[...], seg),
                                 out_ref[...])


def global_sa_module(x, pos, batch, params, num_batches, *,
                     tile_n=2048, num_cores=1, compute_dtype=jnp.bfloat16):
    """GlobalSAModule forward: returns (pooled_features, zero_pos, arange_batch)."""
    N, C = x.shape
    w1, b1, w2, b2, w3, b3 = params
    assert w1.shape[0] == C + 3
    H1, H2, Dout = w1.shape[1], w2.shape[1], w3.shape[1]

    LANE, SUB = 128, 8
    tile_n = _round_up(tile_n, SUB)
    H1p, H2p, Dp = _round_up(H1, LANE), _round_up(H2, LANE), _round_up(Dout, LANE)
    Bp = _round_up(max(num_batches, SUB), SUB)
    f32 = jnp.float32
    Cin = C + 3                       # real input channels (x ++ pos)
    Cp = _round_up(Cin + 1, SUB)      # +1 channel carries the batch id

    # --- padded parameters: bf16 weights for the MXU, f32 biases -------------
    w1p = jnp.zeros((Cp, H1p), f32).at[:Cin, :H1].set(w1.astype(f32)).astype(compute_dtype)
    w2p = jnp.zeros((H1p, H2p), f32).at[:H1, :H2].set(w2.astype(f32)).astype(compute_dtype)
    w3p = jnp.zeros((H2p, Dp), f32).at[:H2, :Dout].set(w3.astype(f32)).astype(compute_dtype)
    b1p = jnp.zeros((1, H1p), f32).at[:, :H1].set(b1.reshape(1, -1).astype(f32))
    b2p = jnp.zeros((1, H2p), f32).at[:, :H2].set(b2.reshape(1, -1).astype(f32))
    b3p = jnp.zeros((1, Dp), f32).at[:, :Dout].set(b3.reshape(1, -1).astype(f32))

    # --- pack [x | pos | batch_id] into one channels-last array --------------
    total_tiles = pl.cdiv(N, tile_n)
    tpc = pl.cdiv(total_tiles, num_cores)     # tiles per core
    n_tiles = num_cores * tpc
    Np = n_tiles * tile_n

    xin = jnp.zeros((Np, Cp), f32)
    xin = xin.at[:N, :C].set(x.astype(f32))
    xin = xin.at[:N, C:Cin].set(pos.astype(f32))
    xin = xin.at[:N, Cin].set(batch.astype(f32))
    # padded rows: bid = num_batches (sentinel, never pooled); features stay 0,
    # and w1 row `Cin` is zero so the bid channel never affects the matmul.
    xin = xin.at[N:, Cin].set(jnp.float32(num_batches))

    # --- per-tile segment bounds for the SMEM scalar prefetch ----------------
    bid_all = jnp.full((Np,), num_batches, jnp.int32).at[:N].set(batch.astype(jnp.int32))
    bid_tiles = bid_all.reshape(n_tiles, tile_n)
    tile_hi = jnp.max(jnp.where(bid_tiles == num_batches, -1, bid_tiles),
                      axis=1).astype(jnp.int32)                       # -1 => empty tile
    tile_lo = jnp.where(tile_hi < 0, 0,
                        jnp.min(bid_tiles, axis=1)).astype(jnp.int32)  # [0,0) when empty

    kernel = functools.partial(_global_sa_kernel, tpc, Cin)

    grid_spec = pltpu.PrefetchScalarGridSpec(
        num_scalar_prefetch=2,
        grid=(num_cores, tpc),
        in_specs=[
            pl.BlockSpec((tile_n, Cp), lambda c, t, lo, hi: (c * tpc + t, 0)),
            pl.BlockSpec((Cp, H1p), lambda c, t, lo, hi: (0, 0)),
            pl.BlockSpec((1, H1p), lambda c, t, lo, hi: (0, 0)),
            pl.BlockSpec((H1p, H2p), lambda c, t, lo, hi: (0, 0)),
            pl.BlockSpec((1, H2p), lambda c, t, lo, hi: (0, 0)),
            pl.BlockSpec((H2p, Dp), lambda c, t, lo, hi: (0, 0)),
            pl.BlockSpec((1, Dp), lambda c, t, lo, hi: (0, 0)),
        ],
        # per-core lane-dense accumulator block, resident across the tile axis
        out_specs=pl.BlockSpec((None, Bp, Dp), lambda c, t, lo, hi: (c, 0, 0)),
    )

    pooled = pl.pallas_call(
        kernel,
        grid_spec=grid_spec,
        out_shape=jax.ShapeDtypeStruct((num_cores, Bp, Dp), f32),
        compiler_params=pltpu.CompilerParams(
            dimension_semantics=("parallel", "arbitrary")),
    )(tile_lo, tile_hi, xin, w1p, b1p, w2p, b2p, w3p, b3p)

    # combine per-core partial maxes (free squeeze when num_cores == 1)
    pooled = pooled[0] if num_cores == 1 else jnp.max(pooled, axis=0)
    pooled = pooled[:num_batches, :Dout]
    pos_out = jnp.zeros((num_batches, 3), dtype=pos.dtype)
    batch_out = jnp.arange(num_batches, dtype=jnp.int32)
    return pooled, pos_out, batch_out


def _reference(x, pos, batch, params, num_batches, matmul_dtype=jnp.float32):
    """Pure-JAX reference; matmul_dtype=bf16 mimics the kernel's MXU precision."""
    w1, b1, w2, b2, w3, b3 = params
    f32 = jnp.float32

    def lin(a, w, b):
        return jnp.dot(a.astype(matmul_dtype), w.astype(matmul_dtype),
                       preferred_element_type=f32) + b.astype(f32)

    xin = jnp.concatenate([x, pos], axis=1).astype(f32)
    h = jnp.maximum(lin(xin, w1, b1), 0.0)
    h = jnp.maximum(lin(h, w2, b2), 0.0)
    h = jnp.maximum(lin(h, w3, b3), 0.0)
    out = jnp.full((num_batches, h.shape[1]), -jnp.inf, dtype=f32)
    out = out.at[batch].max(h)
    return out


if __name__ == "__main__":
    key = jax.random.PRNGKey(0)
    N, C, B = 64, 4, 3           # 64 points, 4 feature channels, 3 graphs
    H1, H2, Dout = 32, 32, 64    # MLP([C+3, 32, 32, 64])
    Din = C + 3

    ks = jax.random.split(key, 8)
    x = jax.random.normal(ks[0], (N, C), jnp.float32)
    pos = jax.random.normal(ks[1], (N, 3), jnp.float32)
    # sorted batch ids with uneven segments that straddle tile boundaries
    seg_sizes = (20, 30, 14)
    batch = jnp.concatenate(
        [jnp.full((s,), i, jnp.int32) for i, s in enumerate(seg_sizes)])

    # deterministic synthetic MLP parameters
    w1 = jax.random.normal(ks[2], (Din, H1), jnp.float32) * 0.3
    b1 = jax.random.normal(ks[3], (1, H1), jnp.float32) * 0.1
    w2 = jax.random.normal(ks[4], (H1, H2), jnp.float32) * 0.3
    b2 = jax.random.normal(ks[5], (1, H2), jnp.float32) * 0.1
    w3 = jax.random.normal(ks[6], (H2, Dout), jnp.float32) * 0.3
    b3 = jax.random.normal(ks[7], (1, Dout), jnp.float32) * 0.1
    params = (w1, b1, w2, b2, w3, b3)

    ref_f32 = _reference(x, pos, batch, params, B, matmul_dtype=jnp.float32)
    ref_bf16 = _reference(x, pos, batch, params, B, matmul_dtype=jnp.bfloat16)

    # small tile_n so multiple point tiles (and the per-tile segment bounds)
    # are exercised; default tile_n=2048 is the production setting.
    pooled, pos_out, batch_out = global_sa_module(
        x, pos, batch, params, B, tile_n=32, num_cores=1)
    jax.block_until_ready(pooled)
    assert pooled.shape == (B, Dout)
    assert pos_out.shape == (B, 3)
    assert batch_out.shape == (B,)
    assert jnp.allclose(pooled, ref_bf16, atol=2e-3, rtol=2e-3), "mismatch vs bf16 ref"
    assert jnp.allclose(pooled, ref_f32, atol=1.5e-1, rtol=5e-2), "mismatch vs f32 ref"

    # exercise the 2-core split path (correct on 1-TC chips too; the parallel
    # axis just iterates serially there)
    pooled2, _, _ = global_sa_module(
        x, pos, batch, params, B, tile_n=32, num_cores=2)
    jax.block_until_ready(pooled2)
    assert jnp.allclose(pooled2, ref_bf16, atol=2e-3, rtol=2e-3), "mismatch (2-core)"

    print("KERNEL_OK")
</pallas_src>

<mosaic_0001>
module attributes {stable_mosaic.version = 11 : i64} {
  func.func @_global_sa_kernel(%arg0: i32, %arg1: i32, %arg2: memref<2xi32, #tpu.memory_space<smem>>, %arg3: memref<2xi32, #tpu.memory_space<smem>>, %arg4: memref<32x8xf32, #tpu.memory_space<vmem>>, %arg5: memref<8x128xbf16, #tpu.memory_space<vmem>>, %arg6: memref<1x128xf32, #tpu.memory_space<vmem>>, %arg7: memref<128x128xbf16, #tpu.memory_space<vmem>>, %arg8: memref<1x128xf32, #tpu.memory_space<vmem>>, %arg9: memref<128x128xbf16, #tpu.memory_space<vmem>>, %arg10: memref<1x128xf32, #tpu.memory_space<vmem>>, %arg11: memref<1x8x128xf32, #tpu.memory_space<vmem>>) attributes {dimension_semantics = [#tpu.dimension_semantics<parallel>, #tpu.dimension_semantics<arbitrary>], iteration_bounds = array<i64: 1, 2>, scalar_prefetch = 2 : i64, scratch_operands = 0 : i64, tpu.core_type = #tpu.core_type<tc>, window_params = [{transform_indices = @transform_0, window_bounds = array<i64: 32, 8>}, {pipeline_mode = #tpu.pipeline_mode<synchronous>, transform_indices = @transform_1, window_bounds = array<i64: 8, 128>}, {pipeline_mode = #tpu.pipeline_mode<synchronous>, transform_indices = @transform_2, window_bounds = array<i64: 1, 128>}, {pipeline_mode = #tpu.pipeline_mode<synchronous>, transform_indices = @transform_3, window_bounds = array<i64: 128, 128>}, {pipeline_mode = #tpu.pipeline_mode<synchronous>, transform_indices = @transform_4, window_bounds = array<i64: 1, 128>}, {pipeline_mode = #tpu.pipeline_mode<synchronous>, transform_indices = @transform_5, window_bounds = array<i64: 128, 128>}, {pipeline_mode = #tpu.pipeline_mode<synchronous>, transform_indices = @transform_6, window_bounds = array<i64: 1, 128>}, {transform_indices = @transform_7, window_bounds = array<i64: 1, 8, 128>}]} {
    %c0_i32 = arith.constant 0 : i32
    %0 = arith.cmpi eq, %arg1, %c0_i32 : i32
    %1 = arith.extui %0 : i1 to i32
    %c0_i32_0 = arith.constant 0 : i32
    %2 = arith.cmpi ne, %1, %c0_i32_0 : i32
    scf.if %2 {
      %cst_25 = arith.constant 0xFF800000 : f32
      %43 = vector.broadcast %cst_25 : f32 to vector<8x128xf32>
      %c0_26 = arith.constant 0 : index
      %c0_27 = arith.constant 0 : index
      %c0_28 = arith.constant 0 : index
      %44 = vector.load %arg11[%c0_26, %c0_27, %c0_28] : memref<1x8x128xf32, #tpu.memory_space<vmem>>, vector<1x8x128xf32>
      %45 = vector.shape_cast %44 : vector<1x8x128xf32> to vector<8x128xf32>
      %46 = vector.shape_cast %43 : vector<8x128xf32> to vector<1x8x128xf32>
      tpu.vector_store %arg11[%c0_26, %c0_27, %c0_28], %46 {strides = array<i32>} : memref<1x8x128xf32, #tpu.memory_space<vmem>>, vector<1x8x128xf32>,
    } else {
    }
    %c0 = arith.constant 0 : index
    %c0_1 = arith.constant 0 : index
    %3 = vector.load %arg4[%c0, %c0_1] : memref<32x8xf32, #tpu.memory_space<vmem>>, vector<32x8xf32>
    %4 = arith.truncf %3 : vector<32x8xf32> to vector<32x8xbf16>
    %c0_2 = arith.constant 0 : index
    %c0_3 = arith.constant 0 : index
    %5 = vector.load %arg5[%c0_2, %c0_3] : memref<8x128xbf16, #tpu.memory_space<vmem>>, vector<8x128xbf16>
    %cst = arith.constant dense<0.000000e+00> : vector<32x128xf32>
    %6 = tpu.matmul %4, %5, %cst {dimension_numbers = #tpu.dot_dimension_numbers<[1], [0], [0], [1], [0, 0, 1, 1], [], []>} : vector<32x8xbf16>, vector<8x128xbf16>, vector<32x128xf32> -> vector<32x128xf32>
    %c0_4 = arith.constant 0 : index
    %c0_5 = arith.constant 0 : index
    %7 = vector.load %arg6[%c0_4, %c0_5] : memref<1x128xf32, #tpu.memory_space<vmem>>, vector<1x128xf32>
    %8 = vector.broadcast %7 : vector<1x128xf32> to vector<32x128xf32>
    %9 = arith.addf %6, %8 : vector<32x128xf32>
    %cst_6 = arith.constant 0.000000e+00 : f32
    %10 = vector.broadcast %cst_6 : f32 to vector<32x128xf32>
    %11 = arith.maximumf %9, %10 : vector<32x128xf32>
    %12 = arith.truncf %11 : vector<32x128xf32> to vector<32x128xbf16>
    %c0_7 = arith.constant 0 : index
    %c0_8 = arith.constant 0 : index
    %13 = vector.load %arg7[%c0_7, %c0_8] : memref<128x128xbf16, #tpu.memory_space<vmem>>, vector<128x128xbf16>
    %cst_9 = arith.constant dense<0.000000e+00> : vector<32x128xf32>
    %14 = tpu.matmul %12, %13, %cst_9 {dimension_numbers = #tpu.dot_dimension_numbers<[1], [0], [0], [1], [0, 0, 1, 1], [], []>} : vector<32x128xbf16>, vector<128x128xbf16>, vector<32x128xf32> -> vector<32x128xf32>
    %c0_10 = arith.constant 0 : index
    %c0_11 = arith.constant 0 : index
    %15 = vector.load %arg8[%c0_10, %c0_11] : memref<1x128xf32, #tpu.memory_space<vmem>>, vector<1x128xf32>
    %16 = vector.broadcast %15 : vector<1x128xf32> to vector<32x128xf32>
    %17 = arith.addf %14, %16 : vector<32x128xf32>
    %cst_12 = arith.constant 0.000000e+00 : f32
    %18 = vector.broadcast %cst_12 : f32 to vector<32x128xf32>
    %19 = arith.maximumf %17, %18 : vector<32x128xf32>
    %20 = arith.truncf %19 : vector<32x128xf32> to vector<32x128xbf16>
    %c0_13 = arith.constant 0 : index
    %c0_14 = arith.constant 0 : index
    %21 = vector.load %arg9[%c0_13, %c0_14] : memref<128x128xbf16, #tpu.memory_space<vmem>>, vector<128x128xbf16>
    %cst_15 = arith.constant dense<0.000000e+00> : vector<32x128xf32>
    %22 = tpu.matmul %20, %21, %cst_15 {dimension_numbers = #tpu.dot_dimension_numbers<[1], [0], [0], [1], [0, 0, 1, 1], [], []>} : vector<32x128xbf16>, vector<128x128xbf16>, vector<32x128xf32> -> vector<32x128xf32>
    %c0_16 = arith.constant 0 : index
    %c0_17 = arith.constant 0 : index
    %23 = vector.load %arg10[%c0_16, %c0_17] : memref<1x128xf32, #tpu.memory_space<vmem>>, vector<1x128xf32>
    %24 = vector.broadcast %23 : vector<1x128xf32> to vector<32x128xf32>
    %25 = arith.addf %22, %24 : vector<32x128xf32>
    %cst_18 = arith.constant 0.000000e+00 : f32
    %26 = vector.broadcast %cst_18 : f32 to vector<32x128xf32>
    %27 = arith.maximumf %25, %26 : vector<32x128xf32>
    %28 = vector.extract_strided_slice %3 {offsets = [0, 7], sizes = [32, 1], strides = [1, 1]} : vector<32x8xf32> to vector<32x1xf32>
    %c2_i32 = arith.constant 2 : i32
    %29 = arith.muli %arg0, %c2_i32 : i32
    %30 = arith.addi %29, %arg1 : i32
    %31 = arith.index_cast %30 : i32 to index
    %32 = memref.load %arg2[%31] : memref<2xi32, #tpu.memory_space<smem>>
    %33 = arith.index_cast %30 : i32 to index
    %34 = memref.load %arg3[%33] : memref<2xi32, #tpu.memory_space<smem>>
    %35 = tpu.iota {dimensions = array<i32: 0>} : vector<8x128xi32>
    %c1_i32 = arith.constant 1 : i32
    %36 = arith.addi %34, %c1_i32 : i32
    %37 = arith.subi %36, %32 : i32
    %c1_i32_19 = arith.constant 1 : i32
    %c1_i32_20 = arith.constant 1 : i32
    %38 = arith.subi %c1_i32_19, %c1_i32_20 : i32
    %39 = arith.addi %37, %38 : i32
    %c1_i32_21 = arith.constant 1 : i32
    %40 = arith.divsi %39, %c1_i32_21 : i32
    %c1_i32_22 = arith.constant 1 : i32
    %c0_i32_23 = arith.constant 0 : i32
    %41 = arith.subi %40, %c0_i32_23 : i32
    %42 = arith.addi %c0_i32_23, %41 : i32
    %c1_i32_24 = arith.constant 1 : i32
    scf.for %arg12 = %c0_i32_23 to %42 step %c1_i32_24  : i32 {
      %43 = arith.muli %arg12, %c1_i32_22 : i32
      %44 = arith.addi %32, %43 : i32
      %45 = arith.sitofp %44 : i32 to f32
      %46 = vector.broadcast %45 : f32 to vector<32x1xf32>
      %47 = arith.cmpf oeq, %28, %46 : vector<32x1xf32>
      %cst_25 = arith.constant 0xFF800000 : f32
      %48 = vector.shape_cast %47 : vector<32x1xi1> to vector<32x1xi1>
      %49 = vector.broadcast %48 : vector<32x1xi1> to vector<32x128xi1>
      %50 = vector.broadcast %cst_25 : f32 to vector<32x128xf32>
      %51 = arith.select %49, %27, %50 : vector<32x128xi1>, vector<32x128xf32>
      %cst_26 = arith.constant dense<0xFF800000> : vector<128xf32>
      %52 = vector.multi_reduction <maximumf>, %51, %cst_26 [0] : vector<32x128xf32> to vector<128xf32>
      %53 = vector.shape_cast %52 : vector<128xf32> to vector<1x128xf32>
      %54 = vector.broadcast %44 : i32 to vector<8x128xi32>
      %55 = arith.cmpi eq, %35, %54 : vector<8x128xi32>
      %c0_27 = arith.constant 0 : index
      %c0_28 = arith.constant 0 : index
      %c0_29 = arith.constant 0 : index
      %56 = vector.load %arg11[%c0_27, %c0_28, %c0_29] : memref<1x8x128xf32, #tpu.memory_space<vmem>>, vector<1x8x128xf32>
      %57 = vector.shape_cast %56 : vector<1x8x128xf32> to vector<8x128xf32>
      %58 = vector.broadcast %53 : vector<1x128xf32> to vector<8x128xf32>
      %59 = arith.maximumf %57, %58 : vector<8x128xf32>
      %c0_30 = arith.constant 0 : index
      %c0_31 = arith.constant 0 : index
      %c0_32 = arith.constant 0 : index
      %60 = vector.load %arg11[%c0_30, %c0_31, %c0_32] : memref<1x8x128xf32, #tpu.memory_space<vmem>>, vector<1x8x128xf32>
      %61 = vector.shape_cast %60 : vector<1x8x128xf32> to vector<8x128xf32>
      %62 = arith.select %55, %59, %61 : vector<8x128xi1>, vector<8x128xf32>
      %c0_33 = arith.constant 0 : index
      %c0_34 = arith.constant 0 : index
      %c0_35 = arith.constant 0 : index
      %63 = vector.load %arg11[%c0_33, %c0_34, %c0_35] : memref<1x8x128xf32, #tpu.memory_space<vmem>>, vector<1x8x128xf32>
      %64 = vector.shape_cast %63 : vector<1x8x128xf32> to vector<8x128xf32>
      %65 = vector.shape_cast %62 : vector<8x128xf32> to vector<1x8x128xf32>
      tpu.vector_store %arg11[%c0_33, %c0_34, %c0_35], %65 {strides = array<i32>} : memref<1x8x128xf32, #tpu.memory_space<vmem>>, vector<1x8x128xf32>,
    }
    return
  }
  func.func @transform_0(%arg0: i32, %arg1: i32, %arg2: memref<2xi32, #tpu.memory_space<smem>>, %arg3: memref<2xi32, #tpu.memory_space<smem>>) -> (i32, i32) {
    %c2_i32 = arith.constant 2 : i32
    %0 = arith.muli %arg0, %c2_i32 : i32
    %1 = arith.addi %0, %arg1 : i32
    %c0_i32 = arith.constant 0 : i32
    %c0_i32_0 = arith.constant 0 : i32
    return %1, %c0_i32 : i32, i32
  }
  func.func @transform_1(%arg0: i32, %arg1: i32, %arg2: memref<2xi32, #tpu.memory_space<smem>>, %arg3: memref<2xi32, #tpu.memory_space<smem>>) -> (i32, i32) {
    %c0_i32 = arith.constant 0 : i32
    %c0_i32_0 = arith.constant 0 : i32
    %c0_i32_1 = arith.constant 0 : i32
    return %c0_i32, %c0_i32_0 : i32, i32
  }
  func.func @transform_2(%arg0: i32, %arg1: i32, %arg2: memref<2xi32, #tpu.memory_space<smem>>, %arg3: memref<2xi32, #tpu.memory_space<smem>>) -> (i32, i32) {
    %c0_i32 = arith.constant 0 : i32
    %c0_i32_0 = arith.constant 0 : i32
    %c0_i32_1 = arith.constant 0 : i32
    return %c0_i32, %c0_i32_0 : i32, i32
  }
  func.func @transform_3(%arg0: i32, %arg1: i32, %arg2: memref<2xi32, #tpu.memory_space<smem>>, %arg3: memref<2xi32, #tpu.memory_space<smem>>) -> (i32, i32) {
    %c0_i32 = arith.constant 0 : i32
    %c0_i32_0 = arith.constant 0 : i32
    %c0_i32_1 = arith.constant 0 : i32
    return %c0_i32, %c0_i32_0 : i32, i32
  }
  func.func @transform_4(%arg0: i32, %arg1: i32, %arg2: memref<2xi32, #tpu.memory_space<smem>>, %arg3: memref<2xi32, #tpu.memory_space<smem>>) -> (i32, i32) {
    %c0_i32 = arith.constant 0 : i32
    %c0_i32_0 = arith.constant 0 : i32
    %c0_i32_1 = arith.constant 0 : i32
    return %c0_i32, %c0_i32_0 : i32, i32
  }
  func.func @transform_5(%arg0: i32, %arg1: i32, %arg2: memref<2xi32, #tpu.memory_space<smem>>, %arg3: memref<2xi32, #tpu.memory_space<smem>>) -> (i32, i32) {
    %c0_i32 = arith.constant 0 : i32
    %c0_i32_0 = arith.constant 0 : i32
    %c0_i32_1 = arith.constant 0 : i32
    return %c0_i32, %c0_i32_0 : i32, i32
  }
  func.func @transform_6(%arg0: i32, %arg1: i32, %arg2: memref<2xi32, #tpu.memory_space<smem>>, %arg3: memref<2xi32, #tpu.memory_space<smem>>) -> (i32, i32) {
    %c0_i32 = arith.constant 0 : i32
    %c0_i32_0 = arith.constant 0 : i32
    %c0_i32_1 = arith.constant 0 : i32
    return %c0_i32, %c0_i32_0 : i32, i32
  }
  func.func @transform_7(%arg0: i32, %arg1: i32, %arg2: memref<2xi32, #tpu.memory_space<smem>>, %arg3: memref<2xi32, #tpu.memory_space<smem>>) -> (i32, i32, i32) {
    %c0_i32 = arith.constant 0 : i32
    %c0_i32_0 = arith.constant 0 : i32
    %c0_i32_1 = arith.constant 0 : i32
    return %arg0, %c0_i32, %c0_i32_0 : i32, i32, i32
  }
}

</mosaic_0001>

<llo_original>
// kernel: tpu_custom_call.1
$region0: #{tpu_custom_call.1}
  #allocation0 [shape = 'u32[]', space=smem, size = 0x4, offset = 0x4, fixed_abs, tag = 'smem constant byte address 0x4 - core index']
  #allocation1 [shape = 'u32[72,128]{1,0:T(1,128)}', space=vmem, size = 0x9000, scoped, tag = 'internal scratch']
  #allocation2 [shape = 's32[1]{0}', space=sflag, size = 0x4, scoped, tag = 'scoped memory for tpu_custom_call.1']
  #allocation3 [shape = 'u8[512]{0}', space=smem, size = 0x200, scoped, tag = 'prefetched SMEM operand 0']
  #allocation4 [shape = 'u8[512]{0}', space=smem, size = 0x200, scoped, tag = 'prefetched SMEM operand 1']
  %s0 = inlined_call_operand.vmem [shape: s32[2], index: 0, kind: input, shape index: {}]
  %s1 = inlined_call_operand.vmem [shape: s32[2], index: 1, kind: input, shape index: {}]
  %s2 = inlined_call_operand.vmem [shape: f32[64,8], index: 2, kind: input, shape index: {}]
  %s3 = inlined_call_operand.vmem [shape: bf16[8,128], index: 3, kind: input, shape index: {}]
  %s4 = inlined_call_operand.vmem [shape: f32[1,128], index: 4, kind: input, shape index: {}]
  %s5 = inlined_call_operand.vmem [shape: bf16[128,128], index: 5, kind: input, shape index: {}]
  %s6 = inlined_call_operand.vmem [shape: f32[1,128], index: 6, kind: input, shape index: {}]
  %s7 = inlined_call_operand.hbm [shape: bf16[128,128], index: 7, kind: input, shape index: {}]
  %s8 = inlined_call_operand.vmem [shape: f32[1,128], index: 8, kind: input, shape index: {}]
  %s9 = inlined_call_operand.hbm [shape: f32[1,8,128], index: 9, kind: output, shape index: {}]
  %s10 = sld [smem:[#allocation0]]
  $region76: #{tpu_custom_call.1} parent=0
    _
  %s12 = ssub.s32 1, %s10
  %s13 = scalar_select 0, %s12, %s10
  %s15 = sshll.u32 %s0, 4
  %s16 = int_to_ptr.vmem [resolvable:$true] %s15
  %18 = dma.vmem_to_smem %s16, 16, [#allocation3], [#allocation2]
  %s20 = sshll.u32 %s1, 4
  %s21 = int_to_ptr.vmem [resolvable:$true] %s20
  %23 = dma.vmem_to_smem %s21, 16, [#allocation4], [#allocation2]
  %25 = dma.done [#allocation2], 32
  %26 = sfence
  $region1: #{tpu_custom_call.1} parent=0
    #allocation5 [shape = 'u8[32768]{0}', space=vmem, size = 0x8000, scoped, tag = 'input window, operand 7, single buffered']
    #allocation6 [shape = 's32[2]{0}', space=sflag, size = 0x8, scoped, tag = 'scoped memory for tpu_custom_call.1']
    #allocation7 [shape = 's32[2]{0}', space=sflag, size = 0x8, scoped, tag = 'scoped memory for tpu_custom_call.1']
    #allocation8 [shape = 'u8[4096]{0}', space=vmem, size = 0x1000, scoped, tag = 'output window, operand 0, single buffered']
    %27 = vsyncpa [#allocation6], 0
    %28 = vsyncpa [#allocation7], 0
    loop: start=0, step=1, limit=4
    $region2: #{tpu_custom_call.1} parent=1 // loop_pre_header
      _
    $region3: #{tpu_custom_call.1} parent=1 // loop_header
      %s30 = sphi 0, %s34
      %p31 = scmp.ge.s32.totalorder %s30, 4
      %s37 = sphi 0, %s49
      %s38 = sphi 0, %s45
      %s39 = sphi 0, %s37
      %s40 = sphi 0, %s38
      %s41 = sphi 0, %s39
      %s42 = sphi 0, %s40
      %s56 = sphi 0, %s58
      %s59 = sphi 0, %s56
      %s60 = sphi 0, %s59
      %s76 = sphi 0, %s60
      %s80 = sphi 0, %s80
      %s82 = sphi 0, %s80
      %s83 = sphi 0, %s82
      %s97 = sphi 0, %s83
      %s101 = sphi 0, %s101
      %s103 = sphi 0, %s101
      %s104 = sphi 0, %s103
      %s118 = sphi 0, %s104
      %s122 = sphi 0, %s122
      %s124 = sphi 0, %s122
      %s125 = sphi 0, %s124
      %s139 = sphi 0, %s125
      %s143 = sphi 0, %s143
      %s145 = sphi 0, %s143
      %s146 = sphi 0, %s145
      %s160 = sphi 0, %s146
      %s164 = sphi 0, %s164
      %s166 = sphi 0, %s164
      %s167 = sphi 0, %s166
      %s181 = sphi 0, %s167
      %s185 = sphi 0, %s185
      %s187 = sphi 0, %s185
      %s188 = sphi 0, %s187
      %s202 = sphi 0, %s188
      %s208 = sphi 0, %s210
      %s211 = sphi 0, %s208
      %s212 = sphi 0, %s211
      %s228 = sphi 0, %s212
    $region4: #{tpu_custom_call.1} parent=1 // loop_header_branch
      %33 = sbr.rel (%p31) target = $region8
    $region5: #{tpu_custom_call.1} parent=1 // loop_body
      %s35 = ssub.s32 %s30, 1
      %s36 = ssub.s32 %s30, 2
      %s43 = sadd.s32 1, %s38
      %p44 = scmp.ge.s32.totalorder %s43, 2
      %s45 = scalar_select %p44, 0, %s43
      %s46 = sadd.s32 1, %s37
      %s47 = scalar_select %p44, %s46, %s37
      %p48 = scmp.ge.s32.totalorder %s47, 1
      %s49 = scalar_select %p48, 0, %s47
      %s50 = smul.u32 %s37, 2
      %s51 = sadd.s32 %s50, %s38
      %s52 = smul.u32 %s49, 2
      %s53 = sadd.s32 %s52, %s45
      %s54 = ssub.s32 %s51, %s53
      %p55 = scmp.eq.s32.totalorder %s54, 0
      %s57 = sadd.s32 %s56, 1
      %s58 = scalar_select %p55, %s56, %s57
      %p61 = pneg %p55
      %p62 = scmp.eq.s32.totalorder %s30, 1
      %p63 = por %p61, %p62
      %p64 = scmp.ne.s32.totalorder %s56, %s59
      %p65 = scmp.eq.s32.totalorder %s30, 0
      %p66 = por %p64, %p65
      %p67 = scmp.ne.s32.totalorder %s56, %s59
      %p68 = scmp.eq.s32.totalorder %s35, 1
      %p69 = por %p67, %p68
      %p70 = scmp.ne.s32.totalorder %s59, %s60
      %p71 = scmp.eq.s32.totalorder %s35, 0
      %p72 = por %p70, %p71
      %p73 = scmp.ne.s32.totalorder %s59, %s60
      %p74 = scmp.eq.s32.totalorder %s36, 1
      %p75 = por %p73, %p74
      %p77 = scmp.ne.s32.totalorder %s60, %s76
      %p78 = scmp.eq.s32.totalorder %s36, 0
      %p79 = por %p77, %p78
      %s81 = sadd.s32 %s80, 1
      %p84 = scmp.eq.s32.totalorder %s30, 1
      %p85 = scmp.ne.s32.totalorder %s80, %s82
      %p86 = scmp.eq.s32.totalorder %s30, 0
      %p87 = por %p85, %p86
      %p88 = scmp.ne.s32.totalorder %s80, %s82
      %p89 = scmp.eq.s32.totalorder %s35, 1
      %p90 = por %p88, %p89
      %p91 = scmp.ne.s32.totalorder %s82, %s83
      %p92 = scmp.eq.s32.totalorder %s35, 0
      %p93 = por %p91, %p92
      %p94 = scmp.ne.s32.totalorder %s82, %s83
      %p95 = scmp.eq.s32.totalorder %s36, 1
      %p96 = por %p94, %p95
      %p98 = scmp.ne.s32.totalorder %s83, %s97
      %p99 = scmp.eq.s32.totalorder %s36, 0
      %p100 = por %p98, %p99
      %s102 = sadd.s32 %s101, 1
      %p105 = scmp.eq.s32.totalorder %s30, 1
      %p106 = scmp.ne.s32.totalorder %s101, %s103
      %p107 = scmp.eq.s32.totalorder %s30, 0
      %p108 = por %p106, %p107
      %p109 = scmp.ne.s32.totalorder %s101, %s103
      %p110 = scmp.eq.s32.totalorder %s35, 1
      %p111 = por %p109, %p110
      %p112 = scmp.ne.s32.totalorder %s103, %s104
      %p113 = scmp.eq.s32.totalorder %s35, 0
      %p114 = por %p112, %p113
      %p115 = scmp.ne.s32.totalorder %s103, %s104
      %p116 = scmp.eq.s32.totalorder %s36, 1
      %p117 = por %p115, %p116
      %p119 = scmp.ne.s32.totalorder %s104, %s118
      %p120 = scmp.eq.s32.totalorder %s36, 0
      %p121 = por %p119, %p120
      %s123 = sadd.s32 %s122, 1
      %p126 = scmp.eq.s32.totalorder %s30, 1
      %p127 = scmp.ne.s32.totalorder %s122, %s124
      %p128 = scmp.eq.s32.totalorder %s30, 0
      %p129 = por %p127, %p128
      %p130 = scmp.ne.s32.totalorder %s122, %s124
      %p131 = scmp.eq.s32.totalorder %s35, 1
      %p132 = por %p130, %p131
      %p133 = scmp.ne.s32.totalorder %s124, %s125
      %p134 = scmp.eq.s32.totalorder %s35, 0
      %p135 = por %p133, %p134
      %p136 = scmp.ne.s32.totalorder %s124, %s125
      %p137 = scmp.eq.s32.totalorder %s36, 1
      %p138 = por %p136, %p137
      %p140 = scmp.ne.s32.totalorder %s125, %s139
      %p141 = scmp.eq.s32.totalorder %s36, 0
      %p142 = por %p140, %p141
      %s144 = sadd.s32 %s143, 1
      %p147 = scmp.eq.s32.totalorder %s30, 1
      %p148 = scmp.ne.s32.totalorder %s143, %s145
      %p149 = scmp.eq.s32.totalorder %s30, 0
      %p150 = por %p148, %p149
      %p151 = scmp.ne.s32.totalorder %s143, %s145
      %p152 = scmp.eq.s32.totalorder %s35, 1
      %p153 = por %p151, %p152
      %p154 = scmp.ne.s32.totalorder %s145, %s146
      %p155 = scmp.eq.s32.totalorder %s35, 0
      %p156 = por %p154, %p155
      %p157 = scmp.ne.s32.totalorder %s145, %s146
      %p158 = scmp.eq.s32.totalorder %s36, 1
      %p159 = por %p157, %p158
      %p161 = scmp.ne.s32.totalorder %s146, %s160
      %p162 = scmp.eq.s32.totalorder %s36, 0
      %p163 = por %p161, %p162
      %s165 = sadd.s32 %s164, 1
      %p168 = scmp.eq.s32.totalorder %s30, 1
      %p169 = scmp.ne.s32.totalorder %s164, %s166
      %p170 = scmp.eq.s32.totalorder %s30, 0
      %p171 = por %p169, %p170
      %p172 = scmp.ne.s32.totalorder %s164, %s166
      %p173 = scmp.eq.s32.totalorder %s35, 1
      %p174 = por %p172, %p173
      %p175 = scmp.ne.s32.totalorder %s166, %s167
      %p176 = scmp.eq.s32.totalorder %s35, 0
      %p177 = por %p175, %p176
      %p178 = scmp.ne.s32.totalorder %s166, %s167
      %p179 = scmp.eq.s32.totalorder %s36, 1
      %p180 = por %p178, %p179
      %p182 = scmp.ne.s32.totalorder %s167, %s181
      %p183 = scmp.eq.s32.totalorder %s36, 0
      %p184 = por %p182, %p183
      %s186 = sadd.s32 %s185, 1
      %p189 = scmp.eq.s32.totalorder %s30, 1
      %p190 = scmp.ne.s32.totalorder %s185, %s187
      %p191 = scmp.eq.s32.totalorder %s30, 0
      %p192 = por %p190, %p191
      %p193 = scmp.ne.s32.totalorder %s185, %s187
      %p194 = scmp.eq.s32.totalorder %s35, 1
      %p195 = por %p193, %p194
      %p196 = scmp.ne.s32.totalorder %s187, %s188
      %p197 = scmp.eq.s32.totalorder %s35, 0
      %p198 = por %p196, %p197
      %p199 = scmp.ne.s32.totalorder %s187, %s188
      %p200 = scmp.eq.s32.totalorder %s36, 1
      %p201 = por %p199, %p200
      %p203 = scmp.ne.s32.totalorder %s188, %s202
      %p204 = scmp.eq.s32.totalorder %s36, 0
      %p205 = por %p203, %p204
      %s206 = ssub.s32 %s37, %s49
      %p207 = scmp.eq.s32.totalorder %s206, 0
      %s209 = sadd.s32 %s208, 1
      %s210 = scalar_select %p207, %s208, %s209
      %p213 = pneg %p207
      %p214 = scmp.eq.s32.totalorder %s30, 1
      %p215 = por %p213, %p214
      %p216 = scmp.ne.s32.totalorder %s208, %s211
      %p217 = scmp.eq.s32.totalorder %s30, 0
      %p218 = por %p216, %p217
      %p219 = scmp.ne.s32.totalorder %s208, %s211
      %p220 = scmp.eq.s32.totalorder %s35, 1
      %p221 = por %p219, %p220
      %p222 = scmp.ne.s32.totalorder %s211, %s212
      %p223 = scmp.eq.s32.totalorder %s35, 0
      %p224 = por %p222, %p223
      %p225 = scmp.ne.s32.totalorder %s211, %s212
      %p226 = scmp.eq.s32.totalorder %s36, 1
      %p227 = por %p225, %p226
      %p229 = scmp.ne.s32.totalorder %s212, %s228
      %p230 = scmp.eq.s32.totalorder %s36, 0
      %p231 = por %p229, %p230
      %p232 = scmp.le.s32.totalorder 1, %s30
      %p233 = scmp.lt.s32.totalorder %s30, 3
      %p234 = pnand %p232, %p233
      %p235 = pneg %p234
      // Predicated region
      $region9: #{tpu_custom_call.1} parent=5 // pred_check
        _
      $region10: #{tpu_custom_call.1} parent=5 // pred_check_branch
        %237 = sbr.rel (%p234) target = $region12
      $region11: #{tpu_custom_call.1} parent=5 // pred_region
        %s238 = ssub.s32 %s30, 1
        // Predicated region
        $region13: #{tpu_custom_call.1} parent=11 // pred_check
          %p239 = pneg %p93
        $region14: #{tpu_custom_call.1} parent=11 // pred_check_branch
          %241 = sbr.rel (%p239) target = $region16
        $region15: #{tpu_custom_call.1} parent=11 // pred_region
          _
        $region16: #{tpu_custom_call.1} parent=11 // pred_fallthru
          _
        // Predicated region
        $region17: #{tpu_custom_call.1} parent=11 // pred_check
          %p242 = pneg %p114
        $region18: #{tpu_custom_call.1} parent=11 // pred_check_branch
          %244 = sbr.rel (%p242) target = $region20
        $region19: #{tpu_custom_call.1} parent=11 // pred_region
          _
        $region20: #{tpu_custom_call.1} parent=11 // pred_fallthru
          _
        // Predicated region
        $region21: #{tpu_custom_call.1} parent=11 // pred_check
          %p245 = pneg %p135
        $region22: #{tpu_custom_call.1} parent=11 // pred_check_branch
          %247 = sbr.rel (%p245) target = $region24
        $region23: #{tpu_custom_call.1} parent=11 // pred_region
          _
        $region24: #{tpu_custom_call.1} parent=11 // pred_fallthru
          _
        // Predicated region
        $region25: #{tpu_custom_call.1} parent=11 // pred_check
          %p248 = pneg %p156
        $region26: #{tpu_custom_call.1} parent=11 // pred_check_branch
          %250 = sbr.rel (%p248) target = $region28
        $region27: #{tpu_custom_call.1} parent=11 // pred_region
          _
        $region28: #{tpu_custom_call.1} parent=11 // pred_fallthru
          _
        // Predicated region
        $region29: #{tpu_custom_call.1} parent=11 // pred_check
          %p251 = pneg %p177
        $region30: #{tpu_custom_call.1} parent=11 // pred_check_branch
          %253 = sbr.rel (%p251) target = $region32
        $region31: #{tpu_custom_call.1} parent=11 // pred_region
          %255 = vsyncadd [#allocation6], 0
          %s256 = sshll.u32 %s7, 4
          %s257 = int_to_ptr.hbm [resolvable:$true] %s256
          %s258 = sshll.u32 [#allocation5], 4
          %s259 = int_to_ptr.vmem [resolvable:$true] %s258
          %264 = dma.hbm_to_vmem [thread:$0]  %s257, 1024, %s259, [#allocation6], 64, 64, 4
        $region32: #{tpu_custom_call.1} parent=11 // pred_fallthru
          _
        // Predicated region
        $region33: #{tpu_custom_call.1} parent=11 // pred_check
          %p265 = pneg %p198
        $region34: #{tpu_custom_call.1} parent=11 // pred_check_branch
          %267 = sbr.rel (%p265) target = $region36
        $region35: #{tpu_custom_call.1} parent=11 // pred_region
          _
        $region36: #{tpu_custom_call.1} parent=11 // pred_fallthru
          _
      $region12: #{tpu_custom_call.1} parent=5 // pred_fallthru
        _
      %p268 = scmp.lt.s32.totalorder %s30, 2
      // Predicated region
      $region37: #{tpu_custom_call.1} parent=5 // pred_check
        %p269 = pneg %p268
      $region38: #{tpu_custom_call.1} parent=5 // pred_check_branch
        %271 = sbr.rel (%p269) target = $region40
      $region39: #{tpu_custom_call.1} parent=5 // pred_region
        // Predicated region
        $region41: #{tpu_custom_call.1} parent=39 // pred_check
          %p272 = pneg %p66
        $region42: #{tpu_custom_call.1} parent=39 // pred_check_branch
          %274 = sbr.rel (%p272) target = $region44
        $region43: #{tpu_custom_call.1} parent=39 // pred_region
          %s275 = smul.u32 %s37, 2
          %s276 = sadd.s32 %s275, %s38
          %s277 = smul.u32 4, %s276
          %p278 = scmp.lt.s32.totalorder %s277, 7
          %s279 = scalar_select %p278, %s277, 7
          %s280 = smul.addr %s279, 8
          %s281 = scalar_lea.vmem %s2, %s280
          %s282 = smul.u32 %s37, 2
          %s283 = sadd.s32 %s282, %s38
          %s284 = smul.u32 4, %s283
        $region44: #{tpu_custom_call.1} parent=39 // pred_fallthru
          _
      $region40: #{tpu_custom_call.1} parent=5 // pred_fallthru
        _
      %p285 = scmp.le.s32.totalorder 1, %s30
      %p286 = scmp.lt.s32.totalorder %s30, 3
      %p287 = pnand %p285, %p286
      %p288 = pneg %p287
      // Predicated region
      $region45: #{tpu_custom_call.1} parent=5 // pred_check
        _
      $region46: #{tpu_custom_call.1} parent=5 // pred_check_branch
        %290 = sbr.rel (%p287) target = $region48
      $region47: #{tpu_custom_call.1} parent=5 // pred_region
        %s291 = ssub.s32 %s30, 1
        // Predicated region
        $region49: #{tpu_custom_call.1} parent=47 // pred_check
          %p292 = pneg %p177
        $region50: #{tpu_custom_call.1} parent=47 // pred_check_branch
          %294 = sbr.rel (%p292) target = $region52
        $region51: #{tpu_custom_call.1} parent=47 // pred_region
          %296 = dma.done [#allocation6], 1024
        $region52: #{tpu_custom_call.1} parent=47 // pred_fallthru
          _
        %s297 = smul.u32 %s39, 2
        %s298 = sadd.s32 %s297, %s40
        %s299 = smul.u32 4, %s298
        %p300 = scmp.lt.s32.totalorder %s299, 7
        %s301 = scalar_select %p300, %s299, 7
        %s302 = smul.addr %s301, 8
        %s303 = scalar_lea.vmem %s2, %s302
        %p304 = pneg %p72
        %p305 = pneg %p69
        %p306 = pneg %p93
        %p307 = pneg %p90
        %p308 = pneg %p114
        %p309 = pneg %p111
        %p310 = pneg %p135
        %p311 = pneg %p132
        %p312 = pneg %p156
        %p313 = pneg %p153
        %p314 = pneg %p177
        %p315 = pneg %p174
        %p316 = pneg %p198
        %p317 = pneg %p195
        %p318 = pneg %p224
        %p319 = pneg %p221
        %s320 = smul.u32 %s39, 2
        %s321 = sadd.s32 %s320, %s40
        %s322 = smul.u32 4, %s321
        %p323 = scmp.lt.s32.totalorder %s322, 7
        %s324 = scalar_select %p323, %s322, 7
        %s325 = smul.addr %s324, 8
        %s326 = scalar_lea.vmem %s2, %s325
        %s327 = smul.u32 %s39, 2
        %s328 = sadd.s32 %s327, %s40
        %s329 = smul.u32 4, %s328
        %p331 = scmp.eq.s32.totalorder %s40, 0
        // Predicated region
        $region53: #{tpu_custom_call.1} parent=47 // pred_check
          %p332 = pneg %p331
        $region54: #{tpu_custom_call.1} parent=47 // pred_check_branch
          %334 = sbr.rel (%p332) target = $region56
        $region55: #{tpu_custom_call.1} parent=47 // pred_region
          %335 = vst [vmem:[#allocation8] sm:$0xff] -inf
        $region56: #{tpu_custom_call.1} parent=47 // pred_fallthru
          _
        %v336 = vld [vmem:[%s326] sm:$0xff]
        %v337 = vld [vmem:[%s326 + $0x8] sm:$0xff]
        %v338 = vld [vmem:[%s326 + $0x10] sm:$0xff]
        %v339 = vld [vmem:[%s326 + $0x18] sm:$0xff]
        %v340 = vpack.c.bf16 %v337, %v336
        %v341 = vpack.c.bf16 %v339, %v338
        %v342 = vld [vmem:[%s3] sm:$0xf]
        %v343 = vld [vmem:[%s4] sm:$0x1]
        %v345 = vperm.slane %v343, 0
        %vm347 = vcmask 64512
        %v349 = vsel %vm347, %v340, 0
        %v352 = vsel %vm347, %v341, 0
        %vm354 = vcmask 1043456
        %v356 = vsel %vm354, %v342, 0
        %358 = vmatpush.bf16.msra.mxu0 0
        %359 = vmatpush.bf16.msra.mxu0 0
        %360 = vmatpush.bf16.msra.mxu0 0
        %361 = vmatpush.bf16.msra.mxu0 0
        %362 = vmatpush.bf16.msra.mxu0 0
        %363 = vmatpush.bf16.msra.mxu0 0
        %364 = vmatpush.bf16.msra.mxu0 0
        %365 = vmatpush.bf16.msra.mxu0 %v356
        %366 = vmatmul.bf16.gmra.mxu0 %v349
        %v367 = vpop.f32.mrf.mxu0
        %v368 = vadd.f32 %v345, %v367
        %v369 = vpop.f32.mrf.mxu0
        %v370 = vadd.f32 %v345, %v369
        %371 = vmatmul.bf16.gmra.mxu0 %v352
        %v372 = vpop.f32.mrf.mxu0
        %v373 = vadd.f32 %v345, %v372
        %v374 = vpop.f32.mrf.mxu0
        %v375 = vadd.f32 %v345, %v374
        %376 = vdwg.mxu0
        %v377 = vmax.f32 %v368, 0.0
        %v378 = vmax.f32 %v370, 0.0
        %v379 = vmax.f32 %v373, 0.0
        %v380 = vmax.f32 %v375, 0.0
        %v381 = vpack.c.bf16 %v378, %v377
        %v382 = vpack.c.bf16 %v380, %v379
        %v383 = vld [vmem:[%s5] sm:$0xf]
        %v384 = vld [vmem:[%s5 + $0x4] sm:$0xf]
        %v385 = vld [vmem:[%s5 + $0x8] sm:$0xf]
        %v386 = vld [vmem:[%s5 + $0xc] sm:$0xf]
        %v387 = vld [vmem:[%s5 + $0x10] sm:$0xf]
        %v388 = vld [vmem:[%s5 + $0x14] sm:$0xf]
        %v389 = vld [vmem:[%s5 + $0x18] sm:$0xf]
        %v390 = vld [vmem:[%s5 + $0x1c] sm:$0xf]
        %v391 = vld [vmem:[%s5 + $0x20] sm:$0xf]
        %v392 = vld [vmem:[%s5 + $0x24] sm:$0xf]
        %v393 = vld [vmem:[%s5 + $0x28] sm:$0xf]
        %v394 = vld [vmem:[%s5 + $0x2c] sm:$0xf]
        %v395 = vld [vmem:[%s5 + $0x30] sm:$0xf]
        %v396 = vld [vmem:[%s5 + $0x34] sm:$0xf]
        %v397 = vld [vmem:[%s5 + $0x38] sm:$0xf]
        %v398 = vld [vmem:[%s5 + $0x3c] sm:$0xf]
        %v399 = vld [vmem:[%s6] sm:$0x1]
        %v401 = vperm.slane %v399, 0
        %v419 = vunpack.c.l.b16 %v383
        %v420 = vunpack.c.l.b16 %v384
        %v421 = vunpack.c.l.b16 %v385
        %v422 = vunpack.c.l.b16 %v386
        %v423 = vunpack.c.l.b16 %v387
        %v424 = vunpack.c.l.b16 %v388
        %v425 = vunpack.c.l.b16 %v389
        %v426 = vunpack.c.l.b16 %v390
        %v427 = vunpack.c.l.b16 %v391
        %v428 = vunpack.c.l.b16 %v392
        %v429 = vunpack.c.l.b16 %v393
        %v430 = vunpack.c.l.b16 %v394
        %v431 = vunpack.c.l.b16 %v395
        %v432 = vunpack.c.l.b16 %v396
        %v433 = vunpack.c.l.b16 %v397
        %v434 = vunpack.c.l.b16 %v398
        %v435 = vpack.c.b16 %v420, %v419
        %v436 = vpack.c.b16 %v422, %v421
        %v437 = vpack.c.b16 %v424, %v423
        %v438 = vpack.c.b16 %v426, %v425
        %v439 = vpack.c.b16 %v428, %v427
        %v440 = vpack.c.b16 %v430, %v429
        %v441 = vpack.c.b16 %v432, %v431
        %v442 = vpack.c.b16 %v434, %v433
        %451 = vmatpush.bf16.msra.mxu0 %v442
        %452 = vmatpush.bf16.msra.mxu0 %v441
        %453 = vmatpush.bf16.msra.mxu0 %v440
        %454 = vmatpush.bf16.msra.mxu0 %v439
        %455 = vmatpush.bf16.msra.mxu0 %v438
        %456 = vmatpush.bf16.msra.mxu0 %v437
        %457 = vmatpush.bf16.msra.mxu0 %v436
        %458 = vmatpush.bf16.msra.mxu0 %v435
        %459 = vmatmul.bf16.gmra.mxu0 %v381
        %v460 = vpop.f32.mrf.mxu0
        %v461 = vadd.f32 %v401, %v460
        %v462 = vpop.f32.mrf.mxu0
        %v463 = vadd.f32 %v401, %v462
        %464 = vmatmul.bf16.gmra.mxu0 %v382
        %v465 = vpop.f32.mrf.mxu0
        %v466 = vadd.f32 %v401, %v465
        %v467 = vpop.f32.mrf.mxu0
        %v468 = vadd.f32 %v401, %v467
        %469 = vdwg.mxu0
        %v470 = vmax.f32 %v461, 0.0
        %v471 = vmax.f32 %v463, 0.0
        %v472 = vmax.f32 %v466, 0.0
        %v473 = vmax.f32 %v468, 0.0
        %v474 = vpack.c.bf16 %v471, %v470
        %v475 = vpack.c.bf16 %v473, %v472
        %v476 = vld [vmem:[#allocation5] sm:$0xf]
        %v477 = vld [vmem:[#allocation5 + $0x4] sm:$0xf]
        %v478 = vld [vmem:[#allocation5 + $0x8] sm:$0xf]
        %v479 = vld [vmem:[#allocation5 + $0xc] sm:$0xf]
        %v480 = vld [vmem:[#allocation5 + $0x10] sm:$0xf]
        %v481 = vld [vmem:[#allocation5 + $0x14] sm:$0xf]
        %v482 = vld [vmem:[#allocation5 + $0x18] sm:$0xf]
        %v483 = vld [vmem:[#allocation5 + $0x1c] sm:$0xf]
        %v484 = vld [vmem:[#allocation5 + $0x20] sm:$0xf]
        %v485 = vld [vmem:[#allocation5 + $0x24] sm:$0xf]
        %v486 = vld [vmem:[#allocation5 + $0x28] sm:$0xf]
        %v487 = vld [vmem:[#allocation5 + $0x2c] sm:$0xf]
        %v488 = vld [vmem:[#allocation5 + $0x30] sm:$0xf]
        %v489 = vld [vmem:[#allocation5 + $0x34] sm:$0xf]
        %v490 = vld [vmem:[#allocation5 + $0x38] sm:$0xf]
        %v491 = vld [vmem:[#allocation5 + $0x3c] sm:$0xf]
        %v492 = vld [vmem:[%s8] sm:$0x1]
        %v494 = vperm.slane %v492, 0
        %v512 = vunpack.c.l.b16 %v476
        %v513 = vunpack.c.l.b16 %v477
        %v514 = vunpack.c.l.b16 %v478
        %v515 = vunpack.c.l.b16 %v479
        %v516 = vunpack.c.l.b16 %v480
        %v517 = vunpack.c.l.b16 %v481
        %v518 = vunpack.c.l.b16 %v482
        %v519 = vunpack.c.l.b16 %v483
        %v520 = vunpack.c.l.b16 %v484
        %v521 = vunpack.c.l.b16 %v485
        %v522 = vunpack.c.l.b16 %v486
        %v523 = vunpack.c.l.b16 %v487
        %v524 = vunpack.c.l.b16 %v488
        %v525 = vunpack.c.l.b16 %v489
        %v526 = vunpack.c.l.b16 %v490
        %v527 = vunpack.c.l.b16 %v491
        %v528 = vpack.c.b16 %v513, %v512
        %v529 = vpack.c.b16 %v515, %v514
        %v530 = vpack.c.b16 %v517, %v516
        %v531 = vpack.c.b16 %v519, %v518
        %v532 = vpack.c.b16 %v521, %v520
        %v533 = vpack.c.b16 %v523, %v522
        %v534 = vpack.c.b16 %v525, %v524
        %v535 = vpack.c.b16 %v527, %v526
        %544 = vmatpush.bf16.msra.mxu0 %v535
        %545 = vmatpush.bf16.msra.mxu0 %v534
        %546 = vmatpush.bf16.msra.mxu0 %v533
        %547 = vmatpush.bf16.msra.mxu0 %v532
        %548 = vmatpush.bf16.msra.mxu0 %v531
        %549 = vmatpush.bf16.msra.mxu0 %v530
        %550 = vmatpush.bf16.msra.mxu0 %v529
        %551 = vmatpush.bf16.msra.mxu0 %v528
        %552 = vmatmul.bf16.gmra.mxu0 %v474
        %v553 = vpop.f32.mrf.mxu0
        %v554 = vadd.f32 %v494, %v553
        %v555 = vpop.f32.mrf.mxu0
        %v556 = vadd.f32 %v494, %v555
        %557 = vmatmul.bf16.gmra.mxu0 %v475
        %v558 = vpop.f32.mrf.mxu0
        %v559 = vadd.f32 %v494, %v558
        %v560 = vpop.f32.mrf.mxu0
        %v561 = vadd.f32 %v494, %v560
        %562 = vdwg.mxu0
        %v563 = vmax.f32 %v554, 0.0
        %v564 = vmax.f32 %v556, 0.0
        %v565 = vmax.f32 %v559, 0.0
        %v566 = vmax.f32 %v561, 0.0
        %s567 = smul.u32 %s39, 2
        %s568 = sadd.s32 %s567, %s40
        %s569 = sld [smem:[#allocation3 + %s568]]
        %s570 = sld [smem:[#allocation4 + %s568]]
        %v571 = vlaneseq
        %v572 = vshrl.u32 %v571, 7
        %s573 = sadd.s32 %s570, 1
        %s574 = ssub.s32 %s573, %s569
        // While loop
        $region57: #{tpu_custom_call.1} parent=47 // loop_pre_header
          _
        $region58: #{tpu_custom_call.1} parent=47 // loop_header
          %s576 = sphi 0, %s578
          %p577 = scmp.ge.s32.totalorder %s576, %s574
        $region59: #{tpu_custom_call.1} parent=47 // loop_header_branch
          %580 = sbr.rel (%p577) target = $region63
        $region60: #{tpu_custom_call.1} parent=47 // loop_body
          %s581 = sadd.s32 %s569, %s576
          %s582 = scvt.s32.f32 %s581
          %v583 = vstv %s582
          %vm584 = vcmp.eq.f32.partialorder %v336, %v583
          %vm585 = vcmp.eq.f32.partialorder %v337, %v583
          %vm586 = vcmp.eq.f32.partialorder %v338, %v583
          %vm587 = vcmp.eq.f32.partialorder %v339, %v583
          %v588 = vsel %vm584, 1, 0
          %v589 = vsel %vm585, 1, 0
          %v590 = vsel %vm586, 1, 0
          %v591 = vsel %vm587, 1, 0
          %592 = vset.pattern.permute.xlu0 7
          %593 = vperm.xlu0 %592, %v588
          %v594 = vpop.permute.xlu0 %593
          %595 = vset.pattern.permute.xlu0 7
          %596 = vperm.xlu0 %595, %v589
          %v597 = vpop.permute.xlu0 %596
          %598 = vset.pattern.permute.xlu0 7
          %599 = vperm.xlu0 %598, %v590
          %v600 = vpop.permute.xlu0 %599
          %601 = vset.pattern.permute.xlu0 7
          %602 = vperm.xlu0 %601, %v591
          %v603 = vpop.permute.xlu0 %602
          %vm604 = vcmp.eq.s32.totalorder %v594, 1
          %vm605 = vcmp.eq.s32.totalorder %v597, 1
          %vm606 = vcmp.eq.s32.totalorder %v600, 1
          %vm607 = vcmp.eq.s32.totalorder %v603, 1
          %v608 = vsel %vm604, %v563, -inf
          %v609 = vsel %vm605, %v564, -inf
          %v610 = vsel %vm606, %v565, -inf
          %v611 = vsel %vm607, %v566, -inf
          %v612 = vmax.f32 %v608, %v609
          %v613 = vmax.f32 %v610, %v611
          %v614 = vmax.f32 %v612, %v613
          %v615 = vrot.slane %v614, 4
          %v616 = vmax.f32 %v614, %v615
          %v617 = vrot.slane %v616, 2
          %v618 = vmax.f32 %v616, %v617
          %v619 = vrot.slane %v618, 1
          %v620 = vmax.f32 %v618, %v619
          %v621 = vstv %s581
          %vm622 = vcmp.eq.s32.totalorder %v572, %v621
          %v623 = vld [vmem:[#allocation8] sm:$0xff]
          %v624 = vmax.f32 %v623, %v620
          %v625 = vsel %vm622, %v624, %v623
          %626 = vst [vmem:[#allocation8] sm:$0xff] %v625
        $region61: #{tpu_custom_call.1} parent=47 // loop_footer
          %s578 = sadd.s32 %s576, 1
        $region62: #{tpu_custom_call.1} parent=47 // loop_footer_branch
          %575 = sbr.rel target = $region58
        $region63: #{tpu_custom_call.1} parent=47 // loop_exit
          _
        // Predicated region
        $region64: #{tpu_custom_call.1} parent=47 // pred_check
          %p627 = pneg %p221
        $region65: #{tpu_custom_call.1} parent=47 // pred_check_branch
          %629 = sbr.rel (%p627) target = $region67
        $region66: #{tpu_custom_call.1} parent=47 // pred_region
          %631 = vsyncadd [#allocation7], 0
          %s632 = smul.addr %s39, 8
          %s633 = scalar_lea.hbm %s9, %s632
          %s635 = sshll.u32 [#allocation8], 4
          %s636 = int_to_ptr.vmem [resolvable:$true] %s635
          %s637 = sshll.u32 %s633, 4
          %s638 = int_to_ptr.hbm [resolvable:$true] %s637
          %640 = dma.vmem_to_hbm [thread:$0]  %s636, 128, %s638, [#allocation7]
        $region67: #{tpu_custom_call.1} parent=47 // pred_fallthru
          _
        // Predicated region
        $region68: #{tpu_custom_call.1} parent=47 // pred_check
          %p641 = pneg %p221
        $region69: #{tpu_custom_call.1} parent=47 // pred_check_branch
          %643 = sbr.rel (%p641) target = $region71
        $region70: #{tpu_custom_call.1} parent=47 // pred_region
          %645 = dma.done [#allocation7], 128
        $region71: #{tpu_custom_call.1} parent=47 // pred_fallthru
          _
      $region48: #{tpu_custom_call.1} parent=5 // pred_fallthru
        _
      %p646 = scmp.le.s32.totalorder 2, %s30
      // Predicated region
      $region72: #{tpu_custom_call.1} parent=5 // pred_check
        %p647 = pneg %p646
      $region73: #{tpu_custom_call.1} parent=5 // pred_check_branch
        %649 = sbr.rel (%p647) target = $region75
      $region74: #{tpu_custom_call.1} parent=5 // pred_region
        %s650 = ssub.s32 %s30, 2
      $region75: #{tpu_custom_call.1} parent=5 // pred_fallthru
        _
    $region6: #{tpu_custom_call.1} parent=1 // loop_footer
      %s34 = sadd.s32 1, %s30
    $region7: #{tpu_custom_call.1} parent=1 // loop_footer_branch
      %29 = sbr.rel target = $region3
    $region8: #{tpu_custom_call.1} parent=1 // loop_exit
      _
    %651 = vsyncpa [#allocation6], 1
    %s652 = scalar_lea.sflag [#allocation6], 1
    %653 = vsyncpa %s652, 1
    %654 = vsyncpa [#allocation7], 1
    %s655 = scalar_lea.sflag [#allocation7], 1
    %656 = vsyncpa %s655, 1

</llo_original>
